<compile_context>
chip_gen: v7x
topology: tpu7x:2x2x1
jax: 0.10.0
libtpu: 0.0.40
codegen_flags: <defaults>
</compile_context>

<pallas_src>
import jax
import jax.numpy as jnp
from functools import partial
from jax.experimental import pallas as pl
from jax.experimental.pallas import tpu as pltpu


# ----------------------------- Pallas kernel --------------------------------
def blend_head_kernel(p_ref, wc_ref, w2_ref, o_ref):
    """Fused (branch-folded) fc1 + ReLU + fc2 in a single grid-less call.

    p_ref : [B, M*C]   bf16  pooled branch inputs, concat-ordered
    wc_ref: [M*C, H]   bf16  branch-proj folded into fc1 (contraction-major)
    w2_ref: [H, Cpad]  bf16  fc2 weight (contraction-major, lane-padded)
    o_ref : [B, Cpad]  f32
    """
    # concat(emb_0..emb_{M-1}) @ W1.T  ==  pooled_all @ W_comb   (weights folded)
    h = jnp.dot(p_ref[...], wc_ref[...], preferred_element_type=jnp.float32)
    h = jnp.maximum(h, 0.0).astype(wc_ref.dtype)          # ReLU, bf16 for MXU
    # fc2 against lane-dense (zero-padded) W2 -> unmasked, lane-dense stores.
    o_ref[...] = jnp.dot(h, w2_ref[...],
                         preferred_element_type=jnp.float32).astype(o_ref.dtype)


# --------------------------- one-time weight prep -----------------------------
def prepare_params(w_branch, w1, w2):
    """One-time layout prep (hoisted out of the per-call path).

    w_branch : [M, F, C]        synthetic branch weights ([out, in] per branch)
    w1       : [H, M*F]         fc1 weight (PyTorch [out_feat, in_feat])
    w2       : [num_classes, H] fc2 weight
    returns  : (W_comb [M*C, H] bf16, W2_pad [H, Cpad] bf16)
    """
    M, F_dim, C = w_branch.shape
    H_dim = w1.shape[0]
    n_classes = w2.shape[0]
    assert w1.shape[1] == M * F_dim

    # TODO(synk): real branch backbones (model_utils.get_emb_model) are
    # arbitrary external models; here they are GAP + linear, so the branch
    # projection folds statically into the fc1 weight.  Real branches would
    # need their own pipeline stage instead of this fold.
    wb_t = jnp.swapaxes(w_branch, 1, 2)                       # [M, C, F]
    w1_t = jnp.transpose(w1).reshape(M, F_dim, H_dim)         # [M, F, H]
    w_comb = jnp.einsum("mcf,mfh->mch", wb_t, w1_t).reshape(M * C, H_dim)

    c_pad = pl.cdiv(n_classes, 128) * 128                     # lane-dense width
    w2_pad = jnp.zeros((H_dim, c_pad), jnp.float32).at[:, :n_classes].set(
        jnp.transpose(w2))                                    # [H, Cpad]

    # bf16 operands, f32 accumulation inside the kernel (v6e/v7x MXU native).
    return w_comb.astype(jnp.bfloat16), w2_pad.astype(jnp.bfloat16)


# ------------------------------ per-call wrapper ------------------------------
@partial(jax.jit, static_argnums=(3,))
def blend_forward(x, w_comb, w2_pad, n_classes):
    """BlendModel forward.

    x       : [M, B, C, Hin, Win]  stacked per-branch NCHW inputs
    returns : [B, n_classes]
    """
    M, B, C, Hin, Win = x.shape

    # GAP for the placeholder branch backbones (tiny: [M, B, C]), laid out in
    # the concat order expected by the folded fc1 weight.
    pooled = jnp.mean(x, axis=(3, 4))                         # [M, B, C]
    pooled_all = jnp.transpose(pooled, (1, 0, 2)).reshape(B, M * C)
    pooled_all = pooled_all.astype(jnp.bfloat16)              # bf16 operands

    c_pad = w2_pad.shape[1]
    vmem = pl.BlockSpec(memory_space=pltpu.MemorySpace.VMEM)
    out_pad = pl.pallas_call(
        blend_head_kernel,
        out_shape=jax.ShapeDtypeStruct((B, c_pad), jnp.float32),
        in_specs=[vmem, vmem, vmem],
        out_specs=vmem,
    )(pooled_all, w_comb, w2_pad)
    return out_pad[:, :n_classes]


# --------------------------------- main ---------------------------------------
if __name__ == "__main__":
    key = jax.random.PRNGKey(0)

    # small shapes consistent with the module
    num_models = 2
    B, C, Hin, Win = 2, 4, 16, 16       # per-branch NCHW input
    feat_dim = 64                       # per-branch embedding dim
    in_features = num_models * feat_dim
    hidden_dim = 256                    # module default
    num_classes = 1

    k_x, k_wb, k_w1, k_w2 = jax.random.split(key, 4)

    # branch inputs (x is a stack of per-branch inputs, like x[i] in torch)
    x = jax.random.normal(k_x, (num_models, B, C, Hin, Win), dtype=jnp.float32)

    # synthetic branch projection weights ([out, in] per branch, stacked)
    w_branch = 0.5 * jax.random.normal(
        k_wb, (num_models, feat_dim, C), dtype=jnp.float32)
    # fc1 weight [hidden, in_features], fc2 weight [num_classes, hidden]
    w1 = 0.1 * jax.random.normal(
        k_w1, (hidden_dim, in_features), dtype=jnp.float32)
    w2 = 0.1 * jax.random.normal(
        k_w2, (num_classes, hidden_dim), dtype=jnp.float32)

    # one-time weight layout prep (not on the per-call path)
    w_comb, w2_pad = prepare_params(w_branch, w1, w2)

    # fused Pallas forward
    out = blend_forward(x, w_comb, w2_pad, num_classes)
    out = jax.block_until_ready(out)

    # pure-JAX f32 reference for sanity
    pooled = jnp.mean(x, axis=(3, 4))                               # [M, B, C]
    emb = jnp.einsum("mbc,mfc->mbf", pooled, w_branch)              # [M, B, F]
    emb_cat = jnp.concatenate([emb[i] for i in range(num_models)], axis=1)
    ref = jnp.maximum(emb_cat @ w1.T, 0.0) @ w2.T                   # [B, nc]

    assert out.shape == (B, num_classes)
    # bf16 operands with f32 accumulation -> looser tolerance vs f32 reference
    assert jnp.allclose(out, ref, atol=2e-2, rtol=2e-2), "mismatch vs reference"

    print("KERNEL_OK")
</pallas_src>

<mosaic_0001>
module attributes {stable_mosaic.version = 11 : i64} {
  func.func @blend_head_kernel(%arg0: memref<2x8xbf16, #tpu.memory_space<vmem>>, %arg1: memref<8x256xbf16, #tpu.memory_space<vmem>>, %arg2: memref<256x128xbf16, #tpu.memory_space<vmem>>, %arg3: memref<2x128xf32, #tpu.memory_space<vmem>>) attributes {dimension_semantics = [], scalar_prefetch = 0 : i64, scratch_operands = 0 : i64, tpu.core_type = #tpu.core_type<tc>} {
    %c0 = arith.constant 0 : index
    %c0_0 = arith.constant 0 : index
    %0 = vector.load %arg0[%c0, %c0_0] : memref<2x8xbf16, #tpu.memory_space<vmem>>, vector<2x8xbf16>
    %c0_1 = arith.constant 0 : index
    %c0_2 = arith.constant 0 : index
    %1 = vector.load %arg1[%c0_1, %c0_2] : memref<8x256xbf16, #tpu.memory_space<vmem>>, vector<8x256xbf16>
    %cst = arith.constant dense<0.000000e+00> : vector<2x256xf32>
    %2 = tpu.matmul %0, %1, %cst {dimension_numbers = #tpu.dot_dimension_numbers<[1], [0], [0], [1], [0, 0, 1, 1], [], []>} : vector<2x8xbf16>, vector<8x256xbf16>, vector<2x256xf32> -> vector<2x256xf32>
    %cst_3 = arith.constant 0.000000e+00 : f32
    %3 = vector.broadcast %cst_3 : f32 to vector<2x256xf32>
    %4 = arith.maximumf %2, %3 : vector<2x256xf32>
    %5 = arith.truncf %4 : vector<2x256xf32> to vector<2x256xbf16>
    %c0_4 = arith.constant 0 : index
    %c0_5 = arith.constant 0 : index
    %6 = vector.load %arg2[%c0_4, %c0_5] : memref<256x128xbf16, #tpu.memory_space<vmem>>, vector<256x128xbf16>
    %cst_6 = arith.constant dense<0.000000e+00> : vector<2x128xf32>
    %7 = tpu.matmul %5, %6, %cst_6 {dimension_numbers = #tpu.dot_dimension_numbers<[1], [0], [0], [1], [0, 0, 1, 1], [], []>} : vector<2x256xbf16>, vector<256x128xbf16>, vector<2x128xf32> -> vector<2x128xf32>
    %c0_7 = arith.constant 0 : index
    %c0_8 = arith.constant 0 : index
    %8 = vector.load %arg3[%c0_7, %c0_8] : memref<2x128xf32, #tpu.memory_space<vmem>>, vector<2x128xf32>
    tpu.vector_store %arg3[%c0_7, %c0_8], %7 {strides = array<i32>} : memref<2x128xf32, #tpu.memory_space<vmem>>, vector<2x128xf32>,
    return
  }
}

</mosaic_0001>

<llo_original>
// kernel: blend_forward.1
$region0: #{blend_forward.1}
  #allocation0 [shape = 'u32[]', space=smem, size = 0x4, offset = 0x4, fixed_abs, tag = 'smem constant byte address 0x4 - core index']
  #allocation1 [shape = 'u32[144,128]{1,0:T(1,128)}', space=vmem, size = 0x12000, scoped, tag = 'internal scratch']
  %s0 = inlined_call_operand.vmem [shape: bf16[2,8], index: 0, kind: input, shape index: {}]
  %s1 = inlined_call_operand.vmem [shape: bf16[8,256], index: 1, kind: input, shape index: {}]
  %s2 = inlined_call_operand.vmem [shape: bf16[256,128], index: 2, kind: input, shape index: {}]
  %s3 = inlined_call_operand.vmem [shape: f32[2,128], index: 3, kind: output, shape index: {}]
  %s4 = sld [smem:[#allocation0]]
  $region22: #{blend_forward.1} parent=0
    _
  %s6 = ssub.s32 1, %s4
  %s7 = scalar_select 0, %s6, %s4
  // Predicated region
  $region2: #{blend_forward.1} parent=0 // pred_check
    _
  $region3: #{blend_forward.1} parent=0 // pred_check_branch
    %9 = sbr.rel (0) target = $region5
  $region4: #{blend_forward.1} parent=0 // pred_region
    _
  $region5: #{blend_forward.1} parent=0 // pred_fallthru
    _
  // Predicated region
  $region6: #{blend_forward.1} parent=0 // pred_check
    _
  $region7: #{blend_forward.1} parent=0 // pred_check_branch
    %11 = sbr.rel (0) target = $region9
  $region8: #{blend_forward.1} parent=0 // pred_region
    _
  $region9: #{blend_forward.1} parent=0 // pred_fallthru
    _
  // Predicated region
  $region10: #{blend_forward.1} parent=0 // pred_check
    _
  $region11: #{blend_forward.1} parent=0 // pred_check_branch
    %13 = sbr.rel (0) target = $region13
  $region12: #{blend_forward.1} parent=0 // pred_region
    _
  $region13: #{blend_forward.1} parent=0 // pred_fallthru
    _
  %v15 = vld [vmem:[%s0] sm:$0x1]
  %v16 = vld [vmem:[%s1] sm:$0xff]
  %v18 = vunpack.c.l.b16 %v16
  %v19 = vunpack.c.h.b16 %v16
  %v20 = vpack.c.b16 %v18, %v18
  %v21 = vpack.c.b16 %v19, %v19
  %vm22 = vcmask 64512
  %v24 = vsel %vm22, %v15, 0
  %vm26 = vcmask 1043456
  %v28 = vsel %vm26, %v20, 0
  %v31 = vsel %vm26, %v21, 0
  %33 = vmatprep.subr.bf16.mxu0 %v31
  %34 = vmatpush1.bf16.msra.mxu0 %v28
  %35 = vmatprep.subr.bf16.mxu0 0
  %36 = vmatpush1.bf16.msra.mxu0 0
  %37 = vmatprep.subr.bf16.mxu0 0
  %38 = vmatpush1.bf16.msra.mxu0 0
  %39 = vmatprep.subr.bf16.mxu0 0
  %40 = vmatpush1.bf16.msra.mxu0 0
  %41 = vmatprep.subr.bf16.mxu0 0
  %42 = vmatpush1.bf16.msra.mxu0 0
  %43 = vmatprep.subr.bf16.mxu0 0
  %44 = vmatpush1.bf16.msra.mxu0 0
  %45 = vmatprep.subr.bf16.mxu0 0
  %46 = vmatpush1.bf16.msra.mxu0 0
  %47 = vmatprep.subr.bf16.mxu0 0
  %48 = vmatpush1.bf16.msra.mxu0 0
  %49 = vmatprep.subr.bf16.mxu0 0
  %50 = vmatpush1.bf16.msra.mxu0 0
  %51 = vmatprep.subr.bf16.mxu0 0
  %52 = vmatpush1.bf16.msra.mxu0 0
  %53 = vmatprep.subr.bf16.mxu0 0
  %54 = vmatpush1.bf16.msra.mxu0 0
  %55 = vmatprep.subr.bf16.mxu0 0
  %56 = vmatpush1.bf16.msra.mxu0 0
  %57 = vmatprep.subr.bf16.mxu0 0
  %58 = vmatpush1.bf16.msra.mxu0 0
  %59 = vmatprep.subr.bf16.mxu0 0
  %60 = vmatpush1.bf16.msra.mxu0 0
  %61 = vmatprep.subr.bf16.mxu0 0
  %62 = vmatpush1.bf16.msra.mxu0 0
  %63 = vmatprep.subr.bf16.mxu0 0
  %64 = vmatpush1.bf16.msra.mxu0 0
  %65 = vmatprep.mubr.bf16.mxu0 0
  %66 = vmatmul.mubr.bf16.gmra.mrb[0].mxu0 %v24
  %v67 = vpop.f32.mrb[0].mxu0
  %v68 = vadd.f32 0.0, %v67
  %v69 = vpop.f32.mrb[0].mxu0
  %v70 = vadd.f32 0.0, %v69
  %v71 = vpop.f32.mrb[0].mxu0
  %v72 = vpop.f32.mrb[0].mxu0
  %73 = vdwg.mxu0
  %v74 = vmax.f32 %v68, 0.0
  %v75 = vmax.f32 %v70, 0.0
  %v76 = vpack.c.bf16 %v74, %v74
  %v77 = vpack.c.bf16 %v75, %v75
  %v78 = vld [vmem:[%s2] sm:$0xf]
  %v79 = vld [vmem:[%s2 + $0x4] sm:$0xf]
  %v80 = vld [vmem:[%s2 + $0x8] sm:$0xf]
  %v81 = vld [vmem:[%s2 + $0xc] sm:$0xf]
  %v82 = vld [vmem:[%s2 + $0x10] sm:$0xf]
  %v83 = vld [vmem:[%s2 + $0x14] sm:$0xf]
  %v84 = vld [vmem:[%s2 + $0x18] sm:$0xf]
  %v85 = vld [vmem:[%s2 + $0x1c] sm:$0xf]
  %v86 = vld [vmem:[%s2 + $0x20] sm:$0xf]
  %v87 = vld [vmem:[%s2 + $0x24] sm:$0xf]
  %v88 = vld [vmem:[%s2 + $0x28] sm:$0xf]
  %v89 = vld [vmem:[%s2 + $0x2c] sm:$0xf]
  %v90 = vld [vmem:[%s2 + $0x30] sm:$0xf]
  %v91 = vld [vmem:[%s2 + $0x34] sm:$0xf]
  %v92 = vld [vmem:[%s2 + $0x38] sm:$0xf]
  %v93 = vld [vmem:[%s2 + $0x3c] sm:$0xf]
  %v94 = vld [vmem:[%s2 + $0x40] sm:$0xf]
  %v95 = vld [vmem:[%s2 + $0x44] sm:$0xf]
  %v96 = vld [vmem:[%s2 + $0x48] sm:$0xf]
  %v97 = vld [vmem:[%s2 + $0x4c] sm:$0xf]
  %v98 = vld [vmem:[%s2 + $0x50] sm:$0xf]
  %v99 = vld [vmem:[%s2 + $0x54] sm:$0xf]
  %v100 = vld [vmem:[%s2 + $0x58] sm:$0xf]
  %v101 = vld [vmem:[%s2 + $0x5c] sm:$0xf]
  %v102 = vld [vmem:[%s2 + $0x60] sm:$0xf]
  %v103 = vld [vmem:[%s2 + $0x64] sm:$0xf]
  %v104 = vld [vmem:[%s2 + $0x68] sm:$0xf]
  %v105 = vld [vmem:[%s2 + $0x6c] sm:$0xf]
  %v106 = vld [vmem:[%s2 + $0x70] sm:$0xf]
  %v107 = vld [vmem:[%s2 + $0x74] sm:$0xf]
  %v108 = vld [vmem:[%s2 + $0x78] sm:$0xf]
  %v109 = vld [vmem:[%s2 + $0x7c] sm:$0xf]
  %v142 = vunpack.c.l.b16 %v78
  %v143 = vunpack.c.l.b16 %v79
  %v144 = vunpack.c.l.b16 %v80
  %v145 = vunpack.c.l.b16 %v81
  %v146 = vunpack.c.l.b16 %v82
  %v147 = vunpack.c.l.b16 %v83
  %v148 = vunpack.c.l.b16 %v84
  %v149 = vunpack.c.l.b16 %v85
  %v150 = vunpack.c.l.b16 %v86
  %v151 = vunpack.c.l.b16 %v87
  %v152 = vunpack.c.l.b16 %v88
  %v153 = vunpack.c.l.b16 %v89
  %v154 = vunpack.c.l.b16 %v90
  %v155 = vunpack.c.l.b16 %v91
  %v156 = vunpack.c.l.b16 %v92
  %v157 = vunpack.c.l.b16 %v93
  %v158 = vunpack.c.l.b16 %v94
  %v159 = vunpack.c.l.b16 %v95
  %v160 = vunpack.c.l.b16 %v96
  %v161 = vunpack.c.l.b16 %v97
  %v162 = vunpack.c.l.b16 %v98
  %v163 = vunpack.c.l.b16 %v99
  %v164 = vunpack.c.l.b16 %v100
  %v165 = vunpack.c.l.b16 %v101
  %v166 = vunpack.c.l.b16 %v102
  %v167 = vunpack.c.l.b16 %v103
  %v168 = vunpack.c.l.b16 %v104
  %v169 = vunpack.c.l.b16 %v105
  %v170 = vunpack.c.l.b16 %v106
  %v171 = vunpack.c.l.b16 %v107
  %v172 = vunpack.c.l.b16 %v108
  %v173 = vunpack.c.l.b16 %v109
  %v174 = vpack.c.b16 %v143, %v142
  %v175 = vpack.c.b16 %v145, %v144
  %v176 = vpack.c.b16 %v147, %v146
  %v177 = vpack.c.b16 %v149, %v148
  %v178 = vpack.c.b16 %v151, %v150
  %v179 = vpack.c.b16 %v153, %v152
  %v180 = vpack.c.b16 %v155, %v154
  %v181 = vpack.c.b16 %v157, %v156
  %v182 = vpack.c.b16 %v159, %v158
  %v183 = vpack.c.b16 %v161, %v160
  %v184 = vpack.c.b16 %v163, %v162
  %v185 = vpack.c.b16 %v165, %v164
  %v186 = vpack.c.b16 %v167, %v166
  %v187 = vpack.c.b16 %v169, %v168
  %v188 = vpack.c.b16 %v171, %v170
  %v189 = vpack.c.b16 %v173, %v172
  %206 = vmatprep.subr.bf16.mxu0 0
  %207 = vmatpush1.bf16.msra.mxu0 %v174
  %208 = vmatprep.subr.bf16.mxu0 0
  %209 = vmatpush1.bf16.msra.mxu0 %v175
  %210 = vmatprep.subr.bf16.mxu0 0
  %211 = vmatpush1.bf16.msra.mxu0 %v176
  %212 = vmatprep.subr.bf16.mxu0 0
  %213 = vmatpush1.bf16.msra.mxu0 %v177
  %214 = vmatprep.subr.bf16.mxu0 0
  %215 = vmatpush1.bf16.msra.mxu0 %v178
  %216 = vmatprep.subr.bf16.mxu0 0
  %217 = vmatpush1.bf16.msra.mxu0 %v179
  %218 = vmatprep.subr.bf16.mxu0 0
  %219 = vmatpush1.bf16.msra.mxu0 %v180
  %220 = vmatprep.subr.bf16.mxu0 0
  %221 = vmatpush1.bf16.msra.mxu0 %v181
  %222 = vmatprep.subr.bf16.mxu0 0
  %223 = vmatpush1.bf16.msra.mxu0 %v182
  %224 = vmatprep.subr.bf16.mxu0 0
  %225 = vmatpush1.bf16.msra.mxu0 %v183
  %226 = vmatprep.subr.bf16.mxu0 0
  %227 = vmatpush1.bf16.msra.mxu0 %v184
  %228 = vmatprep.subr.bf16.mxu0 0
  %229 = vmatpush1.bf16.msra.mxu0 %v185
  %230 = vmatprep.subr.bf16.mxu0 0
  %231 = vmatpush1.bf16.msra.mxu0 %v186
  %232 = vmatprep.subr.bf16.mxu0 0
  %233 = vmatpush1.bf16.msra.mxu0 %v187
  %234 = vmatprep.subr.bf16.mxu0 0
  %235 = vmatpush1.bf16.msra.mxu0 %v188
  %236 = vmatprep.subr.bf16.mxu0 0
  %237 = vmatpush1.bf16.msra.mxu0 %v189
  %238 = vmatprep.mubr.bf16.mxu0 %v77
  %239 = vmatmul.mubr.bf16.gmra.mrb[0].mxu0 %v76
  %v240 = vpop.f32.mrb[0].mxu0
  %v241 = vadd.f32 0.0, %v240
  %v242 = vpop.f32.mrb[0].mxu0
  %v243 = vpop.f32.mrb[0].mxu0
  %v244 = vpop.f32.mrb[0].mxu0
  %245 = vdwg.mxu0
  %246 = vst [vmem:[%s3] sm:$0x3] %v241
  // Predicated region
  $region14: #{blend_forward.1} parent=0 // pred_check
    _
  $region15: #{blend_forward.1} parent=0 // pred_check_branch
    %248 = sbr.rel (0) target = $region17
  $region16: #{blend_forward.1} parent=0 // pred_region
    _
  $region17: #{blend_forward.1} parent=0 // pred_fallthru
    _
  // Predicated region
  $region18: #{blend_forward.1} parent=0 // pred_check
    _
  $region19: #{blend_forward.1} parent=0 // pred_check_branch
    %250 = sbr.rel (0) target = $region21
  $region20: #{blend_forward.1} parent=0 // pred_region
    _
  $region21: #{blend_forward.1} parent=0 // pred_fallthru
    _

</llo_original>
